<compile_context>
chip_gen: v7x
topology: tpu7x:2x2x1
jax: 0.10.0
libtpu: 0.0.40
codegen_flags: <defaults>
</compile_context>

<pallas_src>
import jax
import jax.numpy as jnp
from jax.experimental import pallas as pl
from jax.experimental.pallas import tpu as pltpu


def _identity_kernel(x_ref, o_ref):
    # DummyLayerNorm.forward(x) == x  -> pure copy of the current tile.
    o_ref[...] = x_ref[...]


_LANE = 512                      # lane-dense last dim (multiple of 128)
_BLOCK_BYTES = 2 * 1024 * 1024   # ~2 MiB per block; in+out double-buffered ≈ 8 MiB VMEM


def dummy_layer_norm(x, normalized_shape=None, eps=1e-05):
    """Identity op matching DummyLayerNorm.forward.

    `normalized_shape` and `eps` are accepted (like the nn.Module __init__)
    but unused. Shape/dtype agnostic.
    """
    orig_shape = x.shape
    n = x.size
    if n == 0:
        return x

    itemsize = jnp.dtype(x.dtype).itemsize

    # Rows per block: ~_BLOCK_BYTES worth, rounded to a multiple of 32 sublanes
    # (covers f32 / bf16 / int8 sublane packing).
    rows_per_block = max(32, (_BLOCK_BYTES // (_LANE * itemsize)) // 32 * 32)
    tile_elems = rows_per_block * _LANE

    flat = x.reshape(-1)
    if n <= tile_elems:
        # Single block: pad only up to a whole lane-dense row.
        rows = -(-n // _LANE)
        padded = rows * _LANE
        rt = rows                      # block sublane dim == full array dim -> legal
    else:
        # Pad to a whole number of blocks so no ragged tail block exists.
        padded = -(-n // tile_elems) * tile_elems
        rows = padded // _LANE
        rt = rows_per_block            # multiple of 8 (actually 32)

    if padded != n:
        flat = jnp.pad(flat, (0, padded - n))

    x2d = flat.reshape(rows, _LANE)
    grid = (rows // rt,)

    out2d = pl.pallas_call(
        _identity_kernel,
        out_shape=jax.ShapeDtypeStruct((rows, _LANE), x.dtype),
        grid=grid,
        in_specs=[pl.BlockSpec((rt, _LANE), lambda i: (i, 0))],
        out_specs=pl.BlockSpec((rt, _LANE), lambda i: (i, 0)),
        input_output_aliases={0: 0},   # identity: reuse the input's HBM buffer
        compiler_params=pltpu.CompilerParams(
            dimension_semantics=("parallel",),
        ),
    )(x2d)

    out = out2d.reshape(-1)
    if padded != n:
        out = out[:n]
    return out.reshape(orig_shape)


if __name__ == "__main__":
    key = jax.random.PRNGKey(0)
    B, S, H = 2, 8, 32  # small shapes; forward is shape-agnostic identity
    x = jax.random.normal(key, (B, S, H), dtype=jnp.float32)

    y = dummy_layer_norm(x, normalized_shape=H, eps=1e-05)
    y = jax.block_until_ready(y)

    assert y.shape == x.shape and y.dtype == x.dtype
    assert bool(jnp.all(y == x))
    print("KERNEL_OK")
</pallas_src>

<mosaic_0001>
module attributes {stable_mosaic.version = 11 : i64} {
  func.func @_identity_kernel(%arg0: i32, %arg1: memref<1x512xf32, #tpu.memory_space<vmem>>, %arg2: memref<1x512xf32, #tpu.memory_space<vmem>>) attributes {dimension_semantics = [#tpu.dimension_semantics<parallel>], iteration_bounds = array<i64: 1>, scalar_prefetch = 0 : i64, scratch_operands = 0 : i64, tpu.core_type = #tpu.core_type<tc>, window_params = [{transform_indices = @transform_0, window_bounds = array<i64: 1, 512>}, {transform_indices = @transform_1, window_bounds = array<i64: 1, 512>}]} {
    %c0 = arith.constant 0 : index
    %c0_0 = arith.constant 0 : index
    %0 = vector.load %arg1[%c0, %c0_0] : memref<1x512xf32, #tpu.memory_space<vmem>>, vector<1x512xf32>
    %c0_1 = arith.constant 0 : index
    %c0_2 = arith.constant 0 : index
    %1 = vector.load %arg2[%c0_1, %c0_2] : memref<1x512xf32, #tpu.memory_space<vmem>>, vector<1x512xf32>
    tpu.vector_store %arg2[%c0_1, %c0_2], %0 {strides = array<i32>} : memref<1x512xf32, #tpu.memory_space<vmem>>, vector<1x512xf32>,
    return
  }
  func.func @transform_0(%arg0: i32) -> (i32, i32) {
    %c0_i32 = arith.constant 0 : i32
    %c0_i32_0 = arith.constant 0 : i32
    return %arg0, %c0_i32 : i32, i32
  }
  func.func @transform_1(%arg0: i32) -> (i32, i32) {
    %c0_i32 = arith.constant 0 : i32
    %c0_i32_0 = arith.constant 0 : i32
    return %arg0, %c0_i32 : i32, i32
  }
}

</mosaic_0001>

<llo_original>
// kernel: tpu_custom_call.1
$region0: #{tpu_custom_call.1}
  #allocation0 [shape = 'u32[]', space=smem, size = 0x4, offset = 0x4, fixed_abs, tag = 'smem constant byte address 0x4 - core index']
  #allocation1 [shape = 'u32[144,128]{1,0:T(1,128)}', space=vmem, size = 0x12000, scoped, tag = 'internal scratch']
  %s0 = inlined_call_operand.hbm [shape: f32[1,512], index: 0, kind: input, shape index: {}, may-alias: {0,1}]
  %s1 = inlined_call_operand.hbm [shape: f32[1,512], index: 1, kind: output, shape index: {}, may-alias: {0,1}]
  %s2 = sld [smem:[#allocation0]]
  $region18: #{tpu_custom_call.1} parent=0
    _
  %s4 = ssub.s32 1, %s2
  %s5 = scalar_select 0, %s4, %s2
  $region1: #{tpu_custom_call.1} parent=0
    #allocation2 [shape = 'u8[2048]{0}', space=vmem, size = 0x800, scoped, tag = 'input window, operand 0, single buffered']
    #allocation3 [shape = 's32[1]{0}', space=sflag, size = 0x4, scoped, tag = 'scoped memory for tpu_custom_call.1']
    #allocation4 [shape = 's32[1]{0}', space=sflag, size = 0x4, scoped, tag = 'scoped memory for tpu_custom_call.1']
    #allocation5 [shape = 'u8[2048]{0}', space=vmem, size = 0x800, scoped, tag = 'output window, operand 0, single buffered']
    %6 = vsyncpa [#allocation3], 0
    %7 = vsyncpa [#allocation4], 0
    // Predicated region
    $region2: #{tpu_custom_call.1} parent=1 // pred_check
      _
    $region3: #{tpu_custom_call.1} parent=1 // pred_check_branch
      %9 = sbr.rel (0) target = $region5
    $region4: #{tpu_custom_call.1} parent=1 // pred_region
      %s11 = ssub.s32 64, 64
      %12 = vsyncadd [#allocation3], %s11
      %s14 = sshll.u32 [#allocation2], 4
      %s15 = int_to_ptr.vmem [resolvable:$true] %s14
      %17 = dma.hbm_to_vmem [thread:$0]  %s0, 64, %s15, [#allocation3]
    $region5: #{tpu_custom_call.1} parent=1 // pred_fallthru
      _
    // Predicated region
    $region6: #{tpu_custom_call.1} parent=1 // pred_check
      _
    $region7: #{tpu_custom_call.1} parent=1 // pred_check_branch
      %19 = sbr.rel (0) target = $region9
    $region8: #{tpu_custom_call.1} parent=1 // pred_region
      %20 = dma.done [#allocation3], 64
    $region9: #{tpu_custom_call.1} parent=1 // pred_fallthru
      _
    %v21 = vld [vmem:[#allocation2] sm:$0xf]
    %v22 = vlaneseq
    %vm23 = vcmp.ge.s32.totalorder %v22, 0
    %vm24 = vcmp.lt.s32.totalorder %v22, 512
    %vm25 = vmand %vm23, %vm24
    %26 = vst.msk [vmem:[#allocation5] sm:$0xf] %vm25, %v21
    // Predicated region
    $region10: #{tpu_custom_call.1} parent=1 // pred_check
      _
    $region11: #{tpu_custom_call.1} parent=1 // pred_check_branch
      %28 = sbr.rel (0) target = $region13
    $region12: #{tpu_custom_call.1} parent=1 // pred_region
      %s30 = ssub.s32 64, 64
      %31 = vsyncadd [#allocation4], %s30
      %s33 = sshll.u32 [#allocation5], 4
      %s34 = int_to_ptr.vmem [resolvable:$true] %s33
      %36 = dma.vmem_to_hbm [thread:$0]  %s34, 64, %s1, [#allocation4]
    $region13: #{tpu_custom_call.1} parent=1 // pred_fallthru
      _
    // Predicated region
    $region14: #{tpu_custom_call.1} parent=1 // pred_check
      _
    $region15: #{tpu_custom_call.1} parent=1 // pred_check_branch
      %38 = sbr.rel (0) target = $region17
    $region16: #{tpu_custom_call.1} parent=1 // pred_region
      %39 = dma.done [#allocation4], 64
    $region17: #{tpu_custom_call.1} parent=1 // pred_fallthru
      _
    %40 = vsyncpa [#allocation3], 1
    %41 = vsyncpa [#allocation4], 1

</llo_original>
